<compile_context>
chip_gen: v5e
topology: v5e:2x2
jax: 0.10.0
libtpu: 0.0.40
codegen_flags: <defaults>
</compile_context>

<pallas_src>
import jax
import jax.numpy as jnp
from jax import lax
from jax.experimental import pallas as pl
from jax.experimental.pallas import tpu as pltpu

# SkipLSTM hyper-parameters (real ProSE: nin=21, nout=21, hidden=1024, layers=3;
# kept small here as a synthetic kernel — note 4*HIDDEN = 128 is lane-aligned).
NIN = 21
NOUT = 21
HIDDEN = 32
NUM_LAYERS = 2

NOUT_PAD = 128                      # lane-dense projection output, sliced after
_VMEM_LIMIT = 32 * 1024 * 1024      # safe scoped-VMEM budget on v5e/v6e/v7x


def _round_up(x, m):
    return (x + m - 1) // m * m


# ----------------------------------------------------------------------------
# Fused bidirectional LSTM layer kernel
# ----------------------------------------------------------------------------
def _bilstm_kernel(lens_ref, x_ref, wih_ref, whh_ref, b_ref, out_ref,
                   gx_scr, h_scr, c_scr):
    """Grid = (direction, time-block); direction 0 = forward, 1 = backward.

    lens_ref : (B, 1)      int32 sequence lengths (padded batch rows = 0)
    x_ref    : (TB, B, D)  f32 time-major input block
    wih_ref  : (D, 4H)     bf16, gate columns pre-ordered (i, f, o, g)
    whh_ref  : (H, 4H)     bf16
    b_ref    : (1, 4H)     f32 fused bias (b_ih + b_hh)
    out_ref  : (TB, B, H)  f32 hidden states for this direction / time block

    Packed-sequence semantics: the recurrent state is only advanced at valid
    timesteps (t < len) and outputs past each length are written as zero, so
    the backward direction is exactly an LSTM over the reversed valid prefix
    (what pack_padded_sequence / pad_packed_sequence would produce).
    """
    d = pl.program_id(0)            # direction
    tb = pl.program_id(1)           # time-block counter (grid order)
    nt = pl.num_programs(1)
    TB, B, D = x_ref.shape
    H = h_scr.shape[-1]

    # Reset recurrent state at the first block of each direction.
    @pl.when(tb == 0)
    def _():
        h_scr[...] = jnp.zeros_like(h_scr)
        c_scr[...] = jnp.zeros_like(c_scr)

    # Hoisted input->gate matmul for the whole time block: one MXU call
    # instead of TB tiny ones inside the serial recurrence.
    x_blk = x_ref[...].reshape(TB * B, D).astype(jnp.bfloat16)
    gx = jnp.dot(x_blk, wih_ref[...], preferred_element_type=jnp.float32)
    gx = gx + b_ref[...]
    gx_scr[...] = gx.reshape(TB, B, 4 * H)

    lens = lens_ref[...]                                  # (B, 1) int32

    # Backward direction traverses blocks (and steps inside a block) in
    # reverse time order: idx + d * (n - 1 - 2*idx)  (d is 0 or 1).
    blk = tb + d * (nt - 1 - 2 * tb)
    t0 = blk * TB

    def step(s, carry):
        lt = s + d * (TB - 1 - 2 * s)                     # local timestep
        gt = t0 + lt                                      # global timestep
        valid = gt < lens                                 # (B, 1) bool

        h_prev = h_scr[...]
        gates = gx_scr[lt] + jnp.dot(h_prev.astype(jnp.bfloat16), whh_ref[...],
                                     preferred_element_type=jnp.float32)
        ifo = jax.nn.sigmoid(gates[:, 0:3 * H])           # (i, f, o) in one shot
        g = jnp.tanh(gates[:, 3 * H:4 * H])
        i = ifo[:, 0:H]
        f = ifo[:, H:2 * H]
        o = ifo[:, 2 * H:3 * H]

        c_new = f * c_scr[...] + i * g
        h_new = o * jnp.tanh(c_new)
        # Only advance state at valid steps; emit zeros past each length.
        c_scr[...] = jnp.where(valid, c_new, c_scr[...])
        h_scr[...] = jnp.where(valid, h_new, h_prev)
        out_ref[lt] = jnp.where(valid, h_new, 0.0)
        return carry

    lax.fori_loop(0, TB, step, 0, unroll=True)


def bilstm_layer(x_tm, lens2d, layer_p, t_block):
    """x_tm: (T_pad, B_pad, D) f32; lens2d: (B_pad, 1) int32.
    Returns (2, T_pad, B_pad, H): [0] = forward hiddens, [1] = backward."""
    T_pad, B_pad, D = x_tm.shape
    wih, whh, b = layer_p["wih"], layer_p["whh"], layer_p["b"]
    H = whh.shape[1]
    nt = T_pad // t_block

    def rev(d, tb):                      # reverse block order for backward dir
        return tb + d * (nt - 1 - 2 * tb)

    return pl.pallas_call(
        _bilstm_kernel,
        out_shape=jax.ShapeDtypeStruct((2, T_pad, B_pad, H), jnp.float32),
        grid_spec=pltpu.PrefetchScalarGridSpec(
            num_scalar_prefetch=0,
            grid=(2, nt),
            in_specs=[
                pl.BlockSpec((B_pad, 1), lambda d, tb: (0, 0)),           # lens
                pl.BlockSpec((t_block, B_pad, D),
                             lambda d, tb: (rev(d, tb), 0, 0)),           # x
                pl.BlockSpec((None, D, 4 * H), lambda d, tb: (d, 0, 0)),  # W_ih^T
                pl.BlockSpec((None, H, 4 * H), lambda d, tb: (d, 0, 0)),  # W_hh^T
                pl.BlockSpec((None, 1, 4 * H), lambda d, tb: (d, 0, 0)),  # bias
            ],
            out_specs=pl.BlockSpec((None, t_block, B_pad, H),
                                   lambda d, tb: (d, rev(d, tb), 0, 0)),
            scratch_shapes=[
                pltpu.VMEM((t_block, B_pad, 4 * H), jnp.float32),  # hoisted gx
                pltpu.VMEM((B_pad, H), jnp.float32),               # h state
                pltpu.VMEM((B_pad, H), jnp.float32),               # c state
            ],
        ),
        compiler_params=pltpu.CompilerParams(
            dimension_semantics=("parallel", "arbitrary"),   # fwd/bwd on 2 TCs (v7x)
            vmem_limit_bytes=_VMEM_LIMIT,
        ),
    )(lens2d, x_tm, wih, whh, b)


# ----------------------------------------------------------------------------
# Final linear projection (row-tiled, lane-dense padded output)
# ----------------------------------------------------------------------------
def _proj_kernel(x_ref, w_ref, b_ref, o_ref):
    o_ref[...] = (jnp.dot(x_ref[...], w_ref[...],
                          preferred_element_type=jnp.float32) + b_ref[...])


def linear_proj(x, w_t, b, row_block=128):
    """x: (N, D) f32; w_t: (D, NOUT_PAD) f32; b: (1, NOUT_PAD) -> (N, NOUT_PAD)."""
    N, D = x.shape
    nout_p = w_t.shape[1]
    blk = min(row_block, _round_up(N, 8))
    n_pad = _round_up(N, blk)
    x_p = jnp.pad(x, ((0, n_pad - N), (0, 0)))
    out = pl.pallas_call(
        _proj_kernel,
        out_shape=jax.ShapeDtypeStruct((n_pad, nout_p), jnp.float32),
        grid_spec=pltpu.PrefetchScalarGridSpec(
            num_scalar_prefetch=0,
            grid=(n_pad // blk,),
            in_specs=[pl.BlockSpec((blk, D), lambda i: (i, 0)),
                      pl.BlockSpec((D, nout_p), lambda i: (0, 0)),
                      pl.BlockSpec((1, nout_p), lambda i: (0, 0))],
            out_specs=pl.BlockSpec((blk, nout_p), lambda i: (i, 0)),
        ),
        compiler_params=pltpu.CompilerParams(
            dimension_semantics=("parallel",),
            vmem_limit_bytes=_VMEM_LIMIT,
        ),
    )(x_p, w_t, b)
    return out[:N]


# ----------------------------------------------------------------------------
# SkipLSTM forward (glue in plain JAX, hot paths in Pallas)
# ----------------------------------------------------------------------------
def skiplstm_forward(packed, seq, lens, apply_proj=True, t_block=4):
    B, T = seq.shape
    B_pad = _round_up(B, 8)
    T_pad = _round_up(T, t_block)

    # Time-major, padded token grid / one-hot (pad token = 0; padded positions
    # are sliced off before returning, LSTM outputs there are masked in-kernel).
    seq_tm = jnp.pad(jnp.transpose(seq), ((0, T_pad - T), (0, B_pad - B)))
    one_hot = jax.nn.one_hot(seq_tm, NIN, dtype=jnp.float32)   # (T_pad,B_pad,NIN)
    # TODO(synk): layer-1 x @ W_ih could be a row gather of W_ih by token id
    # (one-hot input), skipping the K=21 matmul; kept generic here.

    lens2d = jnp.pad(lens.astype(jnp.int32), (0, B_pad - B)).reshape(B_pad, 1)

    hs = [one_hot]
    x = one_hot
    for layer_p in packed["layers"]:
        out2 = bilstm_layer(x, lens2d, layer_p, t_block)       # (2,T_pad,B_pad,H)
        x = jnp.concatenate([out2[0], out2[1]], axis=-1)       # (T_pad,B_pad,2H)
        hs.append(x)
    h_cat = jnp.concatenate(hs, axis=-1)                       # (T_pad,B_pad,Dcat)

    if not apply_proj:
        return jnp.transpose(h_cat[:T, :B], (1, 0, 2))         # (B, T, Dcat)

    z = linear_proj(h_cat.reshape(T_pad * B_pad, -1),
                    packed["proj_w_t"], packed["proj_b"])      # (N, NOUT_PAD)
    z = z[:, :NOUT].reshape(T_pad, B_pad, NOUT)
    # TODO(synk): projected values at padded positions still see the raw
    # one-hot (same as the original); exact packed-sequence behavior would
    # zero them, but they are typically discarded downstream.
    return jnp.transpose(z[:T, :B], (1, 0, 2))                 # (B, T, NOUT)


# ----------------------------------------------------------------------------
# Parameter initialization (PyTorch layout) + one-time packing for the kernels
# ----------------------------------------------------------------------------
def init_params(key):
    """PyTorch-style uniform init, PyTorch gate order (i, f, g, o)."""
    def uni(key, shape, bound):
        return jax.random.uniform(key, shape, jnp.float32, -bound, bound)

    params = {"layers": []}
    bound = 1.0 / jnp.sqrt(jnp.float32(HIDDEN))
    dim = NIN
    for _ in range(NUM_LAYERS):
        layer = {}
        for direction in ("fwd", "bwd"):
            key, k1, k2, k3, k4 = jax.random.split(key, 5)
            w_ih = uni(k1, (4 * HIDDEN, dim), bound)
            w_hh = uni(k2, (4 * HIDDEN, HIDDEN), bound)
            b = uni(k3, (4 * HIDDEN,), bound) + uni(k4, (4 * HIDDEN,), bound)
            layer[direction] = (w_ih, w_hh, b)
        params["layers"].append(layer)
        dim = 2 * HIDDEN

    proj_in = NIN + 2 * HIDDEN * NUM_LAYERS
    pbound = 1.0 / jnp.sqrt(jnp.float32(proj_in))
    key, k1, k2 = jax.random.split(key, 3)
    params["proj_w"] = uni(k1, (NOUT, proj_in), pbound)
    params["proj_b"] = uni(k2, (NOUT,), pbound)
    return params


def pack_params(raw):
    """One-time weight prep: transpose, reorder gates (i,f,g,o)->(i,f,o,g),
    fuse/pad biases, cast matmul weights to bf16, stack fwd/bwd along axis 0."""
    H = HIDDEN
    perm = jnp.concatenate([jnp.arange(0, 2 * H),        # i, f
                            jnp.arange(3 * H, 4 * H),    # o
                            jnp.arange(2 * H, 3 * H)])   # g
    layers = []
    for layer in raw["layers"]:
        wih_s, whh_s, b_s = [], [], []
        for direction in ("fwd", "bwd"):
            w_ih, w_hh, b = layer[direction]
            wih_s.append(w_ih[perm].T.astype(jnp.bfloat16))      # (D, 4H)
            whh_s.append(w_hh[perm].T.astype(jnp.bfloat16))      # (H, 4H)
            b_s.append(b[perm].reshape(1, 4 * H).astype(jnp.float32))
        layers.append({"wih": jnp.stack(wih_s),                  # (2, D, 4H)
                       "whh": jnp.stack(whh_s),                  # (2, H, 4H)
                       "b": jnp.stack(b_s)})                     # (2, 1, 4H)

    proj_w_t = jnp.zeros((raw["proj_w"].shape[1], NOUT_PAD), jnp.float32)
    proj_w_t = proj_w_t.at[:, :NOUT].set(raw["proj_w"].T)
    proj_b = jnp.zeros((1, NOUT_PAD), jnp.float32).at[0, :NOUT].set(raw["proj_b"])
    return {"layers": layers, "proj_w_t": proj_w_t, "proj_b": proj_b}


class ProSEMT:
    """Mirrors the PyTorch ProSEMT wrapper: forward just delegates to skipLSTM."""

    def __init__(self, embedding_params, t_block=4):
        self.packed = pack_params(embedding_params)
        self.t_block = t_block

    def __call__(self, seq_unpacked, lens_unpacked, apply_proj=True):
        return skiplstm_forward(self.packed, seq_unpacked, lens_unpacked,
                                apply_proj=apply_proj, t_block=self.t_block)


if __name__ == "__main__":
    key = jax.random.PRNGKey(0)
    k_param, k_seq = jax.random.split(key)

    B, T = 2, 8
    seq_unpacked = jax.random.randint(k_seq, (B, T), 0, NIN, dtype=jnp.int32)
    lens_unpacked = jnp.array([T, 5], dtype=jnp.int32)

    model = ProSEMT(init_params(k_param), t_block=4)

    out = model(seq_unpacked, lens_unpacked, apply_proj=True)     # (B, T, NOUT)
    feats = model(seq_unpacked, lens_unpacked, apply_proj=False)  # (B, T, NIN+2HL)
    jax.block_until_ready(out)
    jax.block_until_ready(feats)

    assert out.shape == (B, T, NOUT)
    assert feats.shape == (B, T, NIN + 2 * HIDDEN * NUM_LAYERS)
    assert bool(jnp.all(jnp.isfinite(out)))
    # packed-sequence masking: LSTM features past each sequence length are 0
    assert bool(jnp.all(feats[1, int(lens_unpacked[1]):, NIN:] == 0.0))
    print("KERNEL_OK")
</pallas_src>

<mosaic_0001>
module attributes {stable_mosaic.version = 11 : i64} {
  func.func @_bilstm_kernel(%arg0: i32, %arg1: i32, %arg2: memref<8x1xi32, #tpu.memory_space<vmem>>, %arg3: memref<4x8x21xf32, #tpu.memory_space<vmem>>, %arg4: memref<1x21x128xbf16, #tpu.memory_space<vmem>>, %arg5: memref<1x32x128xbf16, #tpu.memory_space<vmem>>, %arg6: memref<1x1x128xf32, #tpu.memory_space<vmem>>, %arg7: memref<1x4x8x32xf32, #tpu.memory_space<vmem>>, %arg8: memref<4x8x128xf32, #tpu.memory_space<vmem>>, %arg9: memref<8x32xf32, #tpu.memory_space<vmem>>, %arg10: memref<8x32xf32, #tpu.memory_space<vmem>>) attributes {dimension_semantics = [#tpu.dimension_semantics<parallel>, #tpu.dimension_semantics<arbitrary>], iteration_bounds = array<i64: 2, 2>, scalar_prefetch = 0 : i64, scratch_operands = 3 : i64, tpu.core_type = #tpu.core_type<tc>, window_params = [{pipeline_mode = #tpu.pipeline_mode<synchronous>, transform_indices = @transform_0, window_bounds = array<i64: 8, 1>}, {transform_indices = @transform_1, window_bounds = array<i64: 4, 8, 21>}, {transform_indices = @transform_2, window_bounds = array<i64: 1, 21, 128>}, {transform_indices = @transform_3, window_bounds = array<i64: 1, 32, 128>}, {transform_indices = @transform_4, window_bounds = array<i64: 1, 1, 128>}, {transform_indices = @transform_5, window_bounds = array<i64: 1, 4, 8, 32>}]} {
    %c0_i32 = arith.constant 0 : i32
    %0 = arith.cmpi eq, %arg1, %c0_i32 : i32
    %1 = arith.extui %0 : i1 to i32
    %c0_i32_0 = arith.constant 0 : i32
    %2 = arith.cmpi ne, %1, %c0_i32_0 : i32
    scf.if %2 {
      %cst_110 = arith.constant 0.000000e+00 : f32
      %221 = vector.broadcast %cst_110 : f32 to vector<8x32xf32>
      %c0_111 = arith.constant 0 : index
      %c0_112 = arith.constant 0 : index
      %222 = vector.load %arg9[%c0_111, %c0_112] : memref<8x32xf32, #tpu.memory_space<vmem>>, vector<8x32xf32>
      tpu.vector_store %arg9[%c0_111, %c0_112], %221 {strides = array<i32>} : memref<8x32xf32, #tpu.memory_space<vmem>>, vector<8x32xf32>,
      %cst_113 = arith.constant 0.000000e+00 : f32
      %223 = vector.broadcast %cst_113 : f32 to vector<8x32xf32>
      %c0_114 = arith.constant 0 : index
      %c0_115 = arith.constant 0 : index
      %224 = vector.load %arg10[%c0_114, %c0_115] : memref<8x32xf32, #tpu.memory_space<vmem>>, vector<8x32xf32>
      tpu.vector_store %arg10[%c0_114, %c0_115], %223 {strides = array<i32>} : memref<8x32xf32, #tpu.memory_space<vmem>>, vector<8x32xf32>,
    } else {
    }
    %c0 = arith.constant 0 : index
    %c0_1 = arith.constant 0 : index
    %c0_2 = arith.constant 0 : index
    %3 = vector.load %arg3[%c0, %c0_1, %c0_2] : memref<4x8x21xf32, #tpu.memory_space<vmem>>, vector<4x8x21xf32>
    %4 = vector.shape_cast %3 : vector<4x8x21xf32> to vector<32x21xf32>
    %5 = arith.truncf %4 : vector<32x21xf32> to vector<32x21xbf16>
    %c0_3 = arith.constant 0 : index
    %c0_4 = arith.constant 0 : index
    %c0_5 = arith.constant 0 : index
    %6 = vector.load %arg4[%c0_3, %c0_4, %c0_5] : memref<1x21x128xbf16, #tpu.memory_space<vmem>>, vector<1x21x128xbf16>
    %7 = vector.shape_cast %6 : vector<1x21x128xbf16> to vector<21x128xbf16>
    %cst = arith.constant dense<0.000000e+00> : vector<32x128xf32>
    %8 = tpu.matmul %5, %7, %cst {dimension_numbers = #tpu.dot_dimension_numbers<[1], [0], [0], [1], [0, 0, 1, 1], [], []>} : vector<32x21xbf16>, vector<21x128xbf16>, vector<32x128xf32> -> vector<32x128xf32>
    %c0_6 = arith.constant 0 : index
    %c0_7 = arith.constant 0 : index
    %c0_8 = arith.constant 0 : index
    %9 = vector.load %arg6[%c0_6, %c0_7, %c0_8] : memref<1x1x128xf32, #tpu.memory_space<vmem>>, vector<1x1x128xf32>
    %10 = vector.shape_cast %9 : vector<1x1x128xf32> to vector<1x128xf32>
    %11 = vector.broadcast %10 : vector<1x128xf32> to vector<32x128xf32>
    %12 = arith.addf %8, %11 : vector<32x128xf32>
    %13 = vector.shape_cast %12 : vector<32x128xf32> to vector<4x8x128xf32>
    %c0_9 = arith.constant 0 : index
    %c0_10 = arith.constant 0 : index
    %c0_11 = arith.constant 0 : index
    %14 = vector.load %arg8[%c0_9, %c0_10, %c0_11] : memref<4x8x128xf32, #tpu.memory_space<vmem>>, vector<4x8x128xf32>
    tpu.vector_store %arg8[%c0_9, %c0_10, %c0_11], %13 {strides = array<i32>} : memref<4x8x128xf32, #tpu.memory_space<vmem>>, vector<4x8x128xf32>,
    %c0_12 = arith.constant 0 : index
    %c0_13 = arith.constant 0 : index
    %15 = vector.load %arg2[%c0_12, %c0_13] : memref<8x1xi32, #tpu.memory_space<vmem>>, vector<8x1xi32>
    %c2_i32 = arith.constant 2 : i32
    %16 = arith.muli %c2_i32, %arg1 : i32
    %c1_i32 = arith.constant 1 : i32
    %17 = arith.subi %c1_i32, %16 : i32
    %18 = arith.muli %arg0, %17 : i32
    %19 = arith.addi %arg1, %18 : i32
    %c4_i32 = arith.constant 4 : i32
    %20 = arith.muli %19, %c4_i32 : i32
    %c0_i32_14 = arith.constant 0 : i32
    %c2_i32_15 = arith.constant 2 : i32
    %21 = arith.muli %c2_i32_15, %c0_i32_14 : i32
    %c3_i32 = arith.constant 3 : i32
    %22 = arith.subi %c3_i32, %21 : i32
    %23 = arith.muli %arg0, %22 : i32
    %24 = arith.addi %c0_i32_14, %23 : i32
    %25 = arith.addi %20, %24 : i32
    %26 = vector.broadcast %25 : i32 to vector<8x1xi32>
    %27 = arith.cmpi slt, %26, %15 : vector<8x1xi32>
    %c0_16 = arith.constant 0 : index
    %c0_17 = arith.constant 0 : index
    %28 = vector.load %arg9[%c0_16, %c0_17] : memref<8x32xf32, #tpu.memory_space<vmem>>, vector<8x32xf32>
    %29 = arith.index_cast %24 : i32 to index
    %c0_18 = arith.constant 0 : index
    %c0_19 = arith.constant 0 : index
    %30 = vector.load %arg8[%29, %c0_18, %c0_19] : memref<4x8x128xf32, #tpu.memory_space<vmem>>, vector<1x8x128xf32>
    %31 = vector.shape_cast %30 : vector<1x8x128xf32> to vector<8x128xf32>
    %32 = arith.truncf %28 : vector<8x32xf32> to vector<8x32xbf16>
    %c0_20 = arith.constant 0 : index
    %c0_21 = arith.constant 0 : index
    %c0_22 = arith.constant 0 : index
    %33 = vector.load %arg5[%c0_20, %c0_21, %c0_22] : memref<1x32x128xbf16, #tpu.memory_space<vmem>>, vector<1x32x128xbf16>
    %34 = vector.shape_cast %33 : vector<1x32x128xbf16> to vector<32x128xbf16>
    %cst_23 = arith.constant dense<0.000000e+00> : vector<8x128xf32>
    %35 = tpu.matmul %32, %34, %cst_23 {dimension_numbers = #tpu.dot_dimension_numbers<[1], [0], [0], [1], [0, 0, 1, 1], [], []>} : vector<8x32xbf16>, vector<32x128xbf16>, vector<8x128xf32> -> vector<8x128xf32>
    %36 = arith.addf %31, %35 : vector<8x128xf32>
    %37 = vector.extract_strided_slice %36 {offsets = [0, 0], sizes = [8, 96], strides = [1, 1]} : vector<8x128xf32> to vector<8x96xf32>
    %38 = arith.negf %37 : vector<8x96xf32>
    %39 = math.exp %38 : vector<8x96xf32>
    %cst_24 = arith.constant 1.000000e+00 : f32
    %40 = vector.broadcast %cst_24 : f32 to vector<8x96xf32>
    %41 = arith.addf %40, %39 : vector<8x96xf32>
    %42 = arith.divf %40, %41 : vector<8x96xf32>
    %43 = vector.extract_strided_slice %36 {offsets = [0, 96], sizes = [8, 32], strides = [1, 1]} : vector<8x128xf32> to vector<8x32xf32>
    %44 = math.tanh %43 : vector<8x32xf32>
    %45 = vector.extract_strided_slice %42 {offsets = [0, 0], sizes = [8, 32], strides = [1, 1]} : vector<8x96xf32> to vector<8x32xf32>
    %46 = vector.extract_strided_slice %42 {offsets = [0, 32], sizes = [8, 32], strides = [1, 1]} : vector<8x96xf32> to vector<8x32xf32>
    %47 = vector.extract_strided_slice %42 {offsets = [0, 64], sizes = [8, 32], strides = [1, 1]} : vector<8x96xf32> to vector<8x32xf32>
    %c0_25 = arith.constant 0 : index
    %c0_26 = arith.constant 0 : index
    %48 = vector.load %arg10[%c0_25, %c0_26] : memref<8x32xf32, #tpu.memory_space<vmem>>, vector<8x32xf32>
    %49 = arith.mulf %46, %48 : vector<8x32xf32>
    %50 = arith.mulf %45, %44 : vector<8x32xf32>
    %51 = arith.addf %49, %50 : vector<8x32xf32>
    %52 = math.tanh %51 : vector<8x32xf32>
    %53 = arith.mulf %47, %52 : vector<8x32xf32>
    %c0_27 = arith.constant 0 : index
    %c0_28 = arith.constant 0 : index
    %54 = vector.load %arg10[%c0_27, %c0_28] : memref<8x32xf32, #tpu.memory_space<vmem>>, vector<8x32xf32>
    %55 = vector.shape_cast %27 : vector<8x1xi1> to vector<8x1xi1>
    %56 = vector.broadcast %55 : vector<8x1xi1> to vector<8x32xi1>
    %57 = arith.select %56, %51, %54 : vector<8x32xi1>, vector<8x32xf32>
    %c0_29 = arith.constant 0 : index
    %c0_30 = arith.constant 0 : index
    %58 = vector.load %arg10[%c0_29, %c0_30] : memref<8x32xf32, #tpu.memory_space<vmem>>, vector<8x32xf32>
    tpu.vector_store %arg10[%c0_29, %c0_30], %57 {strides = array<i32>} : memref<8x32xf32, #tpu.memory_space<vmem>>, vector<8x32xf32>,
    %59 = vector.shape_cast %27 : vector<8x1xi1> to vector<8x1xi1>
    %60 = vector.broadcast %59 : vector<8x1xi1> to vector<8x32xi1>
    %61 = arith.select %60, %53, %28 : vector<8x32xi1>, vector<8x32xf32>
    %c0_31 = arith.constant 0 : index
    %c0_32 = arith.constant 0 : index
    %62 = vector.load %arg9[%c0_31, %c0_32] : memref<8x32xf32, #tpu.memory_space<vmem>>, vector<8x32xf32>
    tpu.vector_store %arg9[%c0_31, %c0_32], %61 {strides = array<i32>} : memref<8x32xf32, #tpu.memory_space<vmem>>, vector<8x32xf32>,
    %cst_33 = arith.constant 0.000000e+00 : f32
    %63 = vector.shape_cast %27 : vector<8x1xi1> to vector<8x1xi1>
    %64 = vector.broadcast %63 : vector<8x1xi1> to vector<8x32xi1>
    %65 = vector.broadcast %cst_33 : f32 to vector<8x32xf32>
    %66 = arith.select %64, %53, %65 : vector<8x32xi1>, vector<8x32xf32>
    %c0_34 = arith.constant 0 : index
    %67 = arith.index_cast %24 : i32 to index
    %c0_35 = arith.constant 0 : index
    %c0_36 = arith.constant 0 : index
    %68 = vector.load %arg7[%c0_34, %67, %c0_35, %c0_36] : memref<1x4x8x32xf32, #tpu.memory_space<vmem>>, vector<1x1x8x32xf32>
    %69 = vector.shape_cast %68 : vector<1x1x8x32xf32> to vector<8x32xf32>
    %70 = vector.shape_cast %66 : vector<8x32xf32> to vector<1x1x8x32xf32>
    tpu.vector_store %arg7[%c0_34, %67, %c0_35, %c0_36], %70 {strides = array<i32>} : memref<1x4x8x32xf32, #tpu.memory_space<vmem>>, vector<1x1x8x32xf32>,
    %c1_i32_37 = arith.constant 1 : i32
    %c2_i32_38 = arith.constant 2 : i32
    %71 = arith.muli %c2_i32_38, %c1_i32_37 : i32
    %c3_i32_39 = arith.constant 3 : i32
    %72 = arith.subi %c3_i32_39, %71 : i32
    %73 = arith.muli %arg0, %72 : i32
    %74 = arith.addi %c1_i32_37, %73 : i32
    %75 = arith.addi %20, %74 : i32
    %76 = vector.broadcast %75 : i32 to vector<8x1xi32>
    %77 = arith.cmpi slt, %76, %15 : vector<8x1xi32>
    %c0_40 = arith.constant 0 : index
    %c0_41 = arith.constant 0 : index
    %78 = vector.load %arg9[%c0_40, %c0_41] : memref<8x32xf32, #tpu.memory_space<vmem>>, vector<8x32xf32>
    %79 = arith.index_cast %74 : i32 to index
    %c0_42 = arith.constant 0 : index
    %c0_43 = arith.constant 0 : index
    %80 = vector.load %arg8[%79, %c0_42, %c0_43] : memref<4x8x128xf32, #tpu.memory_space<vmem>>, vector<1x8x128xf32>
    %81 = vector.shape_cast %80 : vector<1x8x128xf32> to vector<8x128xf32>
    %82 = arith.truncf %78 : vector<8x32xf32> to vector<8x32xbf16>
    %c0_44 = arith.constant 0 : index
    %c0_45 = arith.constant 0 : index
    %c0_46 = arith.constant 0 : index
    %83 = vector.load %arg5[%c0_44, %c0_45, %c0_46] : memref<1x32x128xbf16, #tpu.memory_space<vmem>>, vector<1x32x128xbf16>
    %84 = vector.shape_cast %83 : vector<1x32x128xbf16> to vector<32x128xbf16>
    %cst_47 = arith.constant dense<0.000000e+00> : vector<8x128xf32>
    %85 = tpu.matmul %82, %84, %cst_47 {dimension_numbers = #tpu.dot_dimension_numbers<[1], [0], [0], [1], [0, 0, 1, 1], [], []>} : vector<8x32xbf16>, vector<32x128xbf16>, vector<8x128xf32> -> vector<8x128xf32>
    %86 = arith.addf %81, %85 : vector<8x128xf32>
    %87 = vector.extract_strided_slice %86 {offsets = [0, 0], sizes = [8, 96], strides = [1, 1]} : vector<8x128xf32> to vector<8x96xf32>
    %88 = arith.negf %87 : vector<8x96xf32>
    %89 = math.exp %88 : vector<8x96xf32>
    %cst_48 = arith.constant 1.000000e+00 : f32
    %90 = vector.broadcast %cst_48 : f32 to vector<8x96xf32>
    %91 = arith.addf %90, %89 : vector<8x96xf32>
    %92 = arith.divf %90, %91 : vector<8x96xf32>
    %93 = vector.extract_strided_slice %86 {offsets = [0, 96], sizes = [8, 32], strides = [1, 1]} : vector<8x128xf32> to vector<8x32xf32>
    %94 = math.tanh %93 : vector<8x32xf32>
    %95 = vector.extract_strided_slice %92 {offsets = [0, 0], sizes = [8, 32], strides = [1, 1]} : vector<8x96xf32> to vector<8x32xf32>
    %96 = vector.extract_strided_slice %92 {offsets = [0, 32], sizes = [8, 32], strides = [1, 1]} : vector<8x96xf32> to vector<8x32xf32>
    %97 = vector.extract_strided_slice %92 {offsets = [0, 64], sizes = [8, 32], strides = [1, 1]} : vector<8x96xf32> to vector<8x32xf32>
    %c0_49 = arith.constant 0 : index
    %c0_50 = arith.constant 0 : index
    %98 = vector.load %arg10[%c0_49, %c0_50] : memref<8x32xf32, #tpu.memory_space<vmem>>, vector<8x32xf32>
    %99 = arith.mulf %96, %98 : vector<8x32xf32>
    %100 = arith.mulf %95, %94 : vector<8x32xf32>
    %101 = arith.addf %99, %100 : vector<8x32xf32>
    %102 = math.tanh %101 : vector<8x32xf32>
    %103 = arith.mulf %97, %102 : vector<8x32xf32>
    %c0_51 = arith.constant 0 : index
    %c0_52 = arith.constant 0 : index
    %104 = vector.load %arg10[%c0_51, %c0_52] : memref<8x32xf32, #tpu.memory_space<vmem>>, vector<8x32xf32>
    %105 = vector.shape_cast %77 : vector<8x1xi1> to vector<8x1xi1>
    %106 = vector.broadcast %105 : vector<8x1xi1> to vector<8x32xi1>
    %107 = arith.select %106, %101, %104 : vector<8x32xi1>, vector<8x32xf32>
    %c0_53 = arith.constant 0 : index
    %c0_54 = arith.constant 0 : index
    %108 = vector.load %arg10[%c0_53, %c0_54] : memref<8x32xf32, #tpu.memory_space<vmem>>, vector<8x32xf32>
    tpu.vector_store %arg10[%c0_53, %c0_54], %107 {strides = array<i32>} : memref<8x32xf32, #tpu.memory_space<vmem>>, vector<8x32xf32>,
    %109 = vector.shape_cast %77 : vector<8x1xi1> to vector<8x1xi1>
    %110 = vector.broadcast %109 : vector<8x1xi1> to vector<8x32xi1>
    %111 = arith.select %110, %103, %78 : vector<8x32xi1>, vector<8x32xf32>
    %c0_55 = arith.constant 0 : index
    %c0_56 = arith.constant 0 : index
    %112 = vector.load %arg9[%c0_55, %c0_56] : memref<8x32xf32, #tpu.memory_space<vmem>>, vector<8x32xf32>
    tpu.vector_store %arg9[%c0_55, %c0_56], %111 {strides = array<i32>} : memref<8x32xf32, #tpu.memory_space<vmem>>, vector<8x32xf32>,
    %cst_57 = arith.constant 0.000000e+00 : f32
    %113 = vector.shape_cast %77 : vector<8x1xi1> to vector<8x1xi1>
    %114 = vector.broadcast %113 : vector<8x1xi1> to vector<8x32xi1>
    %115 = vector.broadcast %cst_57 : f32 to vector<8x32xf32>
    %116 = arith.select %114, %103, %115 : vector<8x32xi1>, vector<8x32xf32>
    %c0_58 = arith.constant 0 : index
    %117 = arith.index_cast %74 : i32 to index
    %c0_59 = arith.constant 0 : index
    %c0_60 = arith.constant 0 : index
    %118 = vector.load %arg7[%c0_58, %117, %c0_59, %c0_60] : memref<1x4x8x32xf32, #tpu.memory_space<vmem>>, vector<1x1x8x32xf32>
    %119 = vector.shape_cast %118 : vector<1x1x8x32xf32> to vector<8x32xf32>
    %120 = vector.shape_cast %116 : vector<8x32xf32> to vector<1x1x8x32xf32>
    tpu.vector_store %arg7[%c0_58, %117, %c0_59, %c0_60], %120 {strides = array<i32>} : memref<1x4x8x32xf32, #tpu.memory_space<vmem>>, vector<1x1x8x32xf32>,
    %c2_i32_61 = arith.constant 2 : i32
    %c2_i32_62 = arith.constant 2 : i32
    %121 = arith.muli %c2_i32_62, %c2_i32_61 : i32
    %c3_i32_63 = arith.constant 3 : i32
    %122 = arith.subi %c3_i32_63, %121 : i32
    %123 = arith.muli %arg0, %122 : i32
    %124 = arith.addi %c2_i32_61, %123 : i32
    %125 = arith.addi %20, %124 : i32
    %126 = vector.broadcast %125 : i32 to vector<8x1xi32>
    %127 = arith.cmpi slt, %126, %15 : vector<8x1xi32>
    %c0_64 = arith.constant 0 : index
    %c0_65 = arith.constant 0 : index
    %128 = vector.load %arg9[%c0_64, %c0_65] : memref<8x32xf32, #tpu.memory_space<vmem>>, vector<8x32xf32>
    %129 = arith.index_cast %124 : i32 to index
    %c0_66 = arith.constant 0 : index
    %c0_67 = arith.constant 0 : index
    %130 = vector.load %arg8[%129, %c0_66, %c0_67] : memref<4x8x128xf32, #tpu.memory_space<vmem>>, vector<1x8x128xf32>
    %131 = vector.shape_cast %130 : vector<1x8x128xf32> to vector<8x128xf32>
    %132 = arith.truncf %128 : vector<8x32xf32> to vector<8x32xbf16>
    %c0_68 = arith.constant 0 : index
    %c0_69 = arith.constant 0 : index
    %c0_70 = arith.constant 0 : index
    %133 = vector.load %arg5[%c0_68, %c0_69, %c0_70] : memref<1x32x128xbf16, #tpu.memory_space<vmem>>, vector<1x32x128xbf16>
    %134 = vector.shape_cast %133 : vector<1x32x128xbf16> to vector<32x128xbf16>
    %cst_71 = arith.constant dense<0.000000e+00> : vector<8x128xf32>
    %135 = tpu.matmul %132, %134, %cst_71 {dimension_numbers = #tpu.dot_dimension_numbers<[1], [0], [0], [1], [0, 0, 1, 1], [], []>} : vector<8x32xbf16>, vector<32x128xbf16>, vector<8x128xf32> -> vector<8x128xf32>
    %136 = arith.addf %131, %135 : vector<8x128xf32>
    %137 = vector.extract_strided_slice %136 {offsets = [0, 0], sizes = [8, 96], strides = [1, 1]} : vector<8x128xf32> to vector<8x96xf32>
    %138 = arith.negf %137 : vector<8x96xf32>
    %139 = math.exp %138 : vector<8x96xf32>
    %cst_72 = arith.constant 1.000000e+00 : f32
    %140 = vector.broadcast %cst_72 : f32 to vector<8x96xf32>
    %141 = arith.addf %140, %139 : vector<8x96xf32>
    %142 = arith.divf %140, %141 : vector<8x96xf32>
    %143 = vector.extract_strided_slice %136 {offsets = [0, 96], sizes = [8, 32], strides = [1, 1]} : vector<8x128xf32> to vector<8x32xf32>
    %144 = math.tanh %143 : vector<8x32xf32>
    %145 = vector.extract_strided_slice %142 {offsets = [0, 0], sizes = [8, 32], strides = [1, 1]} : vector<8x96xf32> to vector<8x32xf32>
    %146 = vector.extract_strided_slice %142 {offsets = [0, 32], sizes = [8, 32], strides = [1, 1]} : vector<8x96xf32> to vector<8x32xf32>
    %147 = vector.extract_strided_slice %142 {offsets = [0, 64], sizes = [8, 32], strides = [1, 1]} : vector<8x96xf32> to vector<8x32xf32>
    %c0_73 = arith.constant 0 : index
    %c0_74 = arith.constant 0 : index
    %148 = vector.load %arg10[%c0_73, %c0_74] : memref<8x32xf32, #tpu.memory_space<vmem>>, vector<8x32xf32>
    %149 = arith.mulf %146, %148 : vector<8x32xf32>
    %150 = arith.mulf %145, %144 : vector<8x32xf32>
    %151 = arith.addf %149, %150 : vector<8x32xf32>
    %152 = math.tanh %151 : vector<8x32xf32>
    %153 = arith.mulf %147, %152 : vector<8x32xf32>
    %c0_75 = arith.constant 0 : index
    %c0_76 = arith.constant 0 : index
    %154 = vector.load %arg10[%c0_75, %c0_76] : memref<8x32xf32, #tpu.memory_space<vmem>>, vector<8x32xf32>
    %155 = vector.shape_cast %127 : vector<8x1xi1> to vector<8x1xi1>
    %156 = vector.broadcast %155 : vector<8x1xi1> to vector<8x32xi1>
    %157 = arith.select %156, %151, %154 : vector<8x32xi1>, vector<8x32xf32>
    %c0_77 = arith.constant 0 : index
    %c0_78 = arith.constant 0 : index
    %158 = vector.load %arg10[%c0_77, %c0_78] : memref<8x32xf32, #tpu.memory_space<vmem>>, vector<8x32xf32>
    tpu.vector_store %arg10[%c0_77, %c0_78], %157 {strides = array<i32>} : memref<8x32xf32, #tpu.memory_space<vmem>>, vector<8x32xf32>,
    %159 = vector.shape_cast %127 : vector<8x1xi1> to vector<8x1xi1>
    %160 = vector.broadcast %159 : vector<8x1xi1> to vector<8x32xi1>
    %161 = arith.select %160, %153, %128 : vector<8x32xi1>, vector<8x32xf32>
    %c0_79 = arith.constant 0 : index
    %c0_80 = arith.constant 0 : index
    %162 = vector.load %arg9[%c0_79, %c0_80] : memref<8x32xf32, #tpu.memory_space<vmem>>, vector<8x32xf32>
    tpu.vector_store %arg9[%c0_79, %c0_80], %161 {strides = array<i32>} : memref<8x32xf32, #tpu.memory_space<vmem>>, vector<8x32xf32>,
    %cst_81 = arith.constant 0.000000e+00 : f32
    %163 = vector.shape_cast %127 : vector<8x1xi1> to vector<8x1xi1>
    %164 = vector.broadcast %163 : vector<8x1xi1> to vector<8x32xi1>
    %165 = vector.broadcast %cst_81 : f32 to vector<8x32xf32>
    %166 = arith.select %164, %153, %165 : vector<8x32xi1>, vector<8x32xf32>
    %c0_82 = arith.constant 0 : index
    %167 = arith.index_cast %124 : i32 to index
    %c0_83 = arith.constant 0 : index
    %c0_84 = arith.constant 0 : index
    %168 = vector.load %arg7[%c0_82, %167, %c0_83, %c0_84] : memref<1x4x8x32xf32, #tpu.memory_space<vmem>>, vector<1x1x8x32xf32>
    %169 = vector.shape_cast %168 : vector<1x1x8x32xf32> to vector<8x32xf32>
    %170 = vector.shape_cast %166 : vector<8x32xf32> to vector<1x1x8x32xf32>
    tpu.vector_store %arg7[%c0_82, %167, %c0_83, %c0_84], %170 {strides = array<i32>} : memref<1x4x8x32xf32, #tpu.memory_space<vmem>>, vector<1x1x8x32xf32>,
    %c3_i32_85 = arith.constant 3 : i32
    %c2_i32_86 = arith.constant 2 : i32
    %171 = arith.muli %c2_i32_86, %c3_i32_85 : i32
    %c3_i32_87 = arith.constant 3 : i32
    %172 = arith.subi %c3_i32_87, %171 : i32
    %173 = arith.muli %arg0, %172 : i32
    %174 = arith.addi %c3_i32_85, %173 : i32
    %175 = arith.addi %20, %174 : i32
    %176 = vector.broadcast %175 : i32 to vector<8x1xi32>
    %177 = arith.cmpi slt, %176, %15 : vector<8x1xi32>
    %c0_88 = arith.constant 0 : index
    %c0_89 = arith.constant 0 : index
    %178 = vector.load %arg9[%c0_88, %c0_89] : memref<8x32xf32, #tpu.memory_space<vmem>>, vector<8x32xf32>
    %179 = arith.index_cast %174 : i32 to index
    %c0_90 = arith.constant 0 : index
    %c0_91 = arith.constant 0 : index
    %180 = vector.load %arg8[%179, %c0_90, %c0_91] : memref<4x8x128xf32, #tpu.memory_space<vmem>>, vector<1x8x128xf32>
    %181 = vector.shape_cast %180 : vector<1x8x128xf32> to vector<8x128xf32>
    %182 = arith.truncf %178 : vector<8x32xf32> to vector<8x32xbf16>
    %c0_92 = arith.constant 0 : index
    %c0_93 = arith.constant 0 : index
    %c0_94 = arith.constant 0 : index
    %183 = vector.load %arg5[%c0_92, %c0_93, %c0_94] : memref<1x32x128xbf16, #tpu.memory_space<vmem>>, vector<1x32x128xbf16>
    %184 = vector.shape_cast %183 : vector<1x32x128xbf16> to vector<32x128xbf16>
    %cst_95 = arith.constant dense<0.000000e+00> : vector<8x128xf32>
    %185 = tpu.matmul %182, %184, %cst_95 {dimension_numbers = #tpu.dot_dimension_numbers<[1], [0], [0], [1], [0, 0, 1, 1], [], []>} : vector<8x32xbf16>, vector<32x128xbf16>, vector<8x128xf32> -> vector<8x128xf32>
    %186 = arith.addf %181, %185 : vector<8x128xf32>
    %187 = vector.extract_strided_slice %186 {offsets = [0, 0], sizes = [8, 96], strides = [1, 1]} : vector<8x128xf32> to vector<8x96xf32>
    %188 = arith.negf %187 : vector<8x96xf32>
    %189 = math.exp %188 : vector<8x96xf32>
    %cst_96 = arith.constant 1.000000e+00 : f32
    %190 = vector.broadcast %cst_96 : f32 to vector<8x96xf32>
    %191 = arith.addf %190, %189 : vector<8x96xf32>
    %192 = arith.divf %190, %191 : vector<8x96xf32>
    %193 = vector.extract_strided_slice %186 {offsets = [0, 96], sizes = [8, 32], strides = [1, 1]} : vector<8x128xf32> to vector<8x32xf32>
    %194 = math.tanh %193 : vector<8x32xf32>
    %195 = vector.extract_strided_slice %192 {offsets = [0, 0], sizes = [8, 32], strides = [1, 1]} : vector<8x96xf32> to vector<8x32xf32>
    %196 = vector.extract_strided_slice %192 {offsets = [0, 32], sizes = [8, 32], strides = [1, 1]} : vector<8x96xf32> to vector<8x32xf32>
    %197 = vector.extract_strided_slice %192 {offsets = [0, 64], sizes = [8, 32], strides = [1, 1]} : vector<8x96xf32> to vector<8x32xf32>
    %c0_97 = arith.constant 0 : index
    %c0_98 = arith.constant 0 : index
    %198 = vector.load %arg10[%c0_97, %c0_98] : memref<8x32xf32, #tpu.memory_space<vmem>>, vector<8x32xf32>
    %199 = arith.mulf %196, %198 : vector<8x32xf32>
    %200 = arith.mulf %195, %194 : vector<8x32xf32>
    %201 = arith.addf %199, %200 : vector<8x32xf32>
    %202 = math.tanh %201 : vector<8x32xf32>
    %203 = arith.mulf %197, %202 : vector<8x32xf32>
    %c0_99 = arith.constant 0 : index
    %c0_100 = arith.constant 0 : index
    %204 = vector.load %arg10[%c0_99, %c0_100] : memref<8x32xf32, #tpu.memory_space<vmem>>, vector<8x32xf32>
    %205 = vector.shape_cast %177 : vector<8x1xi1> to vector<8x1xi1>
    %206 = vector.broadcast %205 : vector<8x1xi1> to vector<8x32xi1>
    %207 = arith.select %206, %201, %204 : vector<8x32xi1>, vector<8x32xf32>
    %c0_101 = arith.constant 0 : index
    %c0_102 = arith.constant 0 : index
    %208 = vector.load %arg10[%c0_101, %c0_102] : memref<8x32xf32, #tpu.memory_space<vmem>>, vector<8x32xf32>
    tpu.vector_store %arg10[%c0_101, %c0_102], %207 {strides = array<i32>} : memref<8x32xf32, #tpu.memory_space<vmem>>, vector<8x32xf32>,
    %209 = vector.shape_cast %177 : vector<8x1xi1> to vector<8x1xi1>
    %210 = vector.broadcast %209 : vector<8x1xi1> to vector<8x32xi1>
    %211 = arith.select %210, %203, %178 : vector<8x32xi1>, vector<8x32xf32>
    %c0_103 = arith.constant 0 : index
    %c0_104 = arith.constant 0 : index
    %212 = vector.load %arg9[%c0_103, %c0_104] : memref<8x32xf32, #tpu.memory_space<vmem>>, vector<8x32xf32>
    tpu.vector_store %arg9[%c0_103, %c0_104], %211 {strides = array<i32>} : memref<8x32xf32, #tpu.memory_space<vmem>>, vector<8x32xf32>,
    %cst_105 = arith.constant 0.000000e+00 : f32
    %213 = vector.shape_cast %177 : vector<8x1xi1> to vector<8x1xi1>
    %214 = vector.broadcast %213 : vector<8x1xi1> to vector<8x32xi1>
    %215 = vector.broadcast %cst_105 : f32 to vector<8x32xf32>
    %216 = arith.select %214, %203, %215 : vector<8x32xi1>, vector<8x32xf32>
    %c0_106 = arith.constant 0 : index
    %217 = arith.index_cast %174 : i32 to index
    %c0_107 = arith.constant 0 : index
    %c0_108 = arith.constant 0 : index
    %218 = vector.load %arg7[%c0_106, %217, %c0_107, %c0_108] : memref<1x4x8x32xf32, #tpu.memory_space<vmem>>, vector<1x1x8x32xf32>
    %219 = vector.shape_cast %218 : vector<1x1x8x32xf32> to vector<8x32xf32>
    %220 = vector.shape_cast %216 : vector<8x32xf32> to vector<1x1x8x32xf32>
    tpu.vector_store %arg7[%c0_106, %217, %c0_107, %c0_108], %220 {strides = array<i32>} : memref<1x4x8x32xf32, #tpu.memory_space<vmem>>, vector<1x1x8x32xf32>,
    %c4_i32_109 = arith.constant 4 : i32
    return
  }
  func.func @transform_0(%arg0: i32, %arg1: i32) -> (i32, i32) {
    %c0_i32 = arith.constant 0 : i32
    %c0_i32_0 = arith.constant 0 : i32
    %c0_i32_1 = arith.constant 0 : i32
    return %c0_i32, %c0_i32_0 : i32, i32
  }
  func.func @transform_1(%arg0: i32, %arg1: i32) -> (i32, i32, i32) {
    %c2_i32 = arith.constant 2 : i32
    %0 = arith.muli %c2_i32, %arg1 : i32
    %c1_i32 = arith.constant 1 : i32
    %1 = arith.subi %c1_i32, %0 : i32
    %2 = arith.muli %arg0, %1 : i32
    %3 = arith.addi %arg1, %2 : i32
    %c0_i32 = arith.constant 0 : i32
    %c0_i32_0 = arith.constant 0 : i32
    %c0_i32_1 = arith.constant 0 : i32
    return %3, %c0_i32, %c0_i32_0 : i32, i32, i32
  }
  func.func @transform_2(%arg0: i32, %arg1: i32) -> (i32, i32, i32) {
    %c0_i32 = arith.constant 0 : i32
    %c0_i32_0 = arith.constant 0 : i32
    %c0_i32_1 = arith.constant 0 : i32
    return %arg0, %c0_i32, %c0_i32_0 : i32, i32, i32
  }
  func.func @transform_3(%arg0: i32, %arg1: i32) -> (i32, i32, i32) {
    %c0_i32 = arith.constant 0 : i32
    %c0_i32_0 = arith.constant 0 : i32
    %c0_i32_1 = arith.constant 0 : i32
    return %arg0, %c0_i32, %c0_i32_0 : i32, i32, i32
  }
  func.func @transform_4(%arg0: i32, %arg1: i32) -> (i32, i32, i32) {
    %c0_i32 = arith.constant 0 : i32
    %c0_i32_0 = arith.constant 0 : i32
    %c0_i32_1 = arith.constant 0 : i32
    return %arg0, %c0_i32, %c0_i32_0 : i32, i32, i32
  }
  func.func @transform_5(%arg0: i32, %arg1: i32) -> (i32, i32, i32, i32) {
    %c2_i32 = arith.constant 2 : i32
    %0 = arith.muli %c2_i32, %arg1 : i32
    %c1_i32 = arith.constant 1 : i32
    %1 = arith.subi %c1_i32, %0 : i32
    %2 = arith.muli %arg0, %1 : i32
    %3 = arith.addi %arg1, %2 : i32
    %c0_i32 = arith.constant 0 : i32
    %c0_i32_0 = arith.constant 0 : i32
    %c0_i32_1 = arith.constant 0 : i32
    return %arg0, %3, %c0_i32, %c0_i32_0 : i32, i32, i32, i32
  }
}

</mosaic_0001>

<llo_original>
// kernel: tpu_custom_call.1
$region0: #{tpu_custom_call.1}
  #allocation0 [shape = 'u32[]', space=smem, size = 0x4, offset = 0x4, fixed_abs, tag = 'smem constant byte address 0x4 - core index']
  #allocation1 [shape = 'u32[72,128]{1,0:T(1,128)}', space=vmem, size = 0x9000, scoped, tag = 'internal scratch']
  #allocation2 [shape = 'f32[4,8,128]{2,1,0:T(8,128)}', space=vmem, size = 0x4000, scoped, tag = 'scratch operand']
  #allocation3 [shape = 'f32[8,32]{1,0:T(8,128)}', space=vmem, size = 0x1000, scoped, tag = 'scratch operand']
  #allocation4 [shape = 'f32[8,32]{1,0:T(8,128)}', space=vmem, size = 0x1000, scoped, tag = 'scratch operand']
  %s0 = inlined_call_operand.vmem [shape: s32[8,1], index: 0, kind: input, shape index: {}]
  %s1 = inlined_call_operand.hbm [shape: f32[8,8,21], index: 1, kind: input, shape index: {}]
  %s2 = inlined_call_operand.vmem [shape: bf16[2,21,128], index: 2, kind: input, shape index: {}]
  %s3 = inlined_call_operand.vmem [shape: bf16[2,32,128], index: 3, kind: input, shape index: {}]
  %s4 = inlined_call_operand.vmem [shape: f32[2,1,128], index: 4, kind: input, shape index: {}]
  %s5 = inlined_call_operand.hbm [shape: f32[2,8,8,32], index: 5, kind: output, shape index: {}]
  %s6 = sld [smem:[#allocation0]]
  $region61: #{tpu_custom_call.1} parent=0
    _
  %s8 = ssub.s32 1, %s6
  %s9 = scalar_select 0, %s8, %s6
  $region1: #{tpu_custom_call.1} parent=0
    #allocation5 [shape = 'u8[32768]{0}', space=vmem, size = 0x8000, scoped, tag = 'input window, operand 1']
    #allocation6 [shape = 's32[2]{0}', space=sflag, size = 0x8, scoped, tag = 'scoped memory for tpu_custom_call.1']
    #allocation7 [shape = 's32[2]{0}', space=sflag, size = 0x8, scoped, tag = 'scoped memory for tpu_custom_call.1']
    #allocation8 [shape = 'u8[32768]{0}', space=vmem, size = 0x8000, scoped, tag = 'output window, operand 0']
    %10 = vsyncpa [#allocation6], 0
    %s11 = scalar_lea.sflag [#allocation6], 1
    %12 = vsyncpa %s11, 0
    %13 = vsyncpa [#allocation7], 0
    %s14 = scalar_lea.sflag [#allocation7], 1
    %15 = vsyncpa %s14, 0
    loop: start=0, step=1, limit=6
    $region2: #{tpu_custom_call.1} parent=1 // loop_pre_header
      _
    $region3: #{tpu_custom_call.1} parent=1 // loop_header
      %s17 = sphi 0, %s21
      %p18 = scmp.ge.s32.totalorder %s17, 6
      %s24 = sphi 0, %s36
      %s25 = sphi 0, %s32
      %s26 = sphi 0, %s24
      %s27 = sphi 0, %s25
      %s28 = sphi 0, %s26
      %s29 = sphi 0, %s27
      %s37 = sphi 0, %s37
      %s39 = sphi 0, %s37
      %s40 = sphi 0, %s39
      %s54 = sphi 0, %s40
      %s68 = sphi 0, %s70
      %s71 = sphi 0, %s68
      %s72 = sphi 0, %s71
      %s88 = sphi 0, %s72
      %s94 = sphi 0, %s96
      %s97 = sphi 0, %s94
      %s98 = sphi 0, %s97
      %s114 = sphi 0, %s98
      %s120 = sphi 0, %s122
      %s123 = sphi 0, %s120
      %s124 = sphi 0, %s123
      %s140 = sphi 0, %s124
      %s146 = sphi 0, %s148
      %s149 = sphi 0, %s146
      %s150 = sphi 0, %s149
      %s166 = sphi 0, %s150
      %s182 = sphi 0, %s184
      %s185 = sphi 0, %s182
      %s186 = sphi 0, %s185
      %s202 = sphi 0, %s186
    $region4: #{tpu_custom_call.1} parent=1 // loop_header_branch
      %20 = sbr.rel (%p18) target = $region8
    $region5: #{tpu_custom_call.1} parent=1 // loop_body
      %s22 = ssub.s32 %s17, 1
      %s23 = ssub.s32 %s17, 2
      %s30 = sadd.s32 1, %s25
      %p31 = scmp.ge.s32.totalorder %s30, 2
      %s32 = scalar_select %p31, 0, %s30
      %s33 = sadd.s32 1, %s24
      %s34 = scalar_select %p31, %s33, %s24
      %p35 = scmp.ge.s32.totalorder %s34, 2
      %s36 = scalar_select %p35, 0, %s34
      %s38 = sadd.s32 %s37, 1
      %p41 = scmp.eq.s32.totalorder %s17, 3
      %p42 = scmp.ne.s32.totalorder %s37, %s39
      %p43 = scmp.eq.s32.totalorder %s17, 0
      %p44 = por %p42, %p43
      %p45 = scmp.ne.s32.totalorder %s37, %s39
      %p46 = scmp.eq.s32.totalorder %s22, 3
      %p47 = por %p45, %p46
      %p48 = scmp.ne.s32.totalorder %s39, %s40
      %p49 = scmp.eq.s32.totalorder %s22, 0
      %p50 = por %p48, %p49
      %p51 = scmp.ne.s32.totalorder %s39, %s40
      %p52 = scmp.eq.s32.totalorder %s23, 3
      %p53 = por %p51, %p52
      %p55 = scmp.ne.s32.totalorder %s40, %s54
      %p56 = scmp.eq.s32.totalorder %s23, 0
      %p57 = por %p55, %p56
      %s58 = smul.u32 %s25, 2
      %s59 = ssub.s32 1, %s58
      %s60 = smul.u32 %s24, %s59
      %s61 = sadd.s32 %s25, %s60
      %s62 = smul.u32 %s32, 2
      %s63 = ssub.s32 1, %s62
      %s64 = smul.u32 %s36, %s63
      %s65 = sadd.s32 %s32, %s64
      %s66 = ssub.s32 %s61, %s65
      %p67 = scmp.eq.s32.totalorder %s66, 0
      %s69 = sadd.s32 %s68, 1
      %s70 = scalar_select %p67, %s68, %s69
      %p73 = pneg %p67
      %p74 = scmp.eq.s32.totalorder %s17, 3
      %p75 = por %p73, %p74
      %p76 = scmp.ne.s32.totalorder %s68, %s71
      %p77 = scmp.eq.s32.totalorder %s17, 0
      %p78 = por %p76, %p77
      %p79 = scmp.ne.s32.totalorder %s68, %s71
      %p80 = scmp.eq.s32.totalorder %s22, 3
      %p81 = por %p79, %p80
      %p82 = scmp.ne.s32.totalorder %s71, %s72
      %p83 = scmp.eq.s32.totalorder %s22, 0
      %p84 = por %p82, %p83
      %p85 = scmp.ne.s32.totalorder %s71, %s72
      %p86 = scmp.eq.s32.totalorder %s23, 3
      %p87 = por %p85, %p86
      %p89 = scmp.ne.s32.totalorder %s72, %s88
      %p90 = scmp.eq.s32.totalorder %s23, 0
      %p91 = por %p89, %p90
      %s92 = ssub.s32 %s24, %s36
      %p93 = scmp.eq.s32.totalorder %s92, 0
      %s95 = sadd.s32 %s94, 1
      %s96 = scalar_select %p93, %s94, %s95
      %p99 = pneg %p93
      %p100 = scmp.eq.s32.totalorder %s17, 3
      %p101 = por %p99, %p100
      %p102 = scmp.ne.s32.totalorder %s94, %s97
      %p103 = scmp.eq.s32.totalorder %s17, 0
      %p104 = por %p102, %p103
      %p105 = scmp.ne.s32.totalorder %s94, %s97
      %p106 = scmp.eq.s32.totalorder %s22, 3
      %p107 = por %p105, %p106
      %p108 = scmp.ne.s32.totalorder %s97, %s98
      %p109 = scmp.eq.s32.totalorder %s22, 0
      %p110 = por %p108, %p109
      %p111 = scmp.ne.s32.totalorder %s97, %s98
      %p112 = scmp.eq.s32.totalorder %s23, 3
      %p113 = por %p111, %p112
      %p115 = scmp.ne.s32.totalorder %s98, %s114
      %p116 = scmp.eq.s32.totalorder %s23, 0
      %p117 = por %p115, %p116
      %s118 = ssub.s32 %s24, %s36
      %p119 = scmp.eq.s32.totalorder %s118, 0
      %s121 = sadd.s32 %s120, 1
      %s122 = scalar_select %p119, %s120, %s121
      %p125 = pneg %p119
      %p126 = scmp.eq.s32.totalorder %s17, 3
      %p127 = por %p125, %p126
      %p128 = scmp.ne.s32.totalorder %s120, %s123
      %p129 = scmp.eq.s32.totalorder %s17, 0
      %p130 = por %p128, %p129
      %p131 = scmp.ne.s32.totalorder %s120, %s123
      %p132 = scmp.eq.s32.totalorder %s22, 3
      %p133 = por %p131, %p132
      %p134 = scmp.ne.s32.totalorder %s123, %s124
      %p135 = scmp.eq.s32.totalorder %s22, 0
      %p136 = por %p134, %p135
      %p137 = scmp.ne.s32.totalorder %s123, %s124
      %p138 = scmp.eq.s32.totalorder %s23, 3
      %p139 = por %p137, %p138
      %p141 = scmp.ne.s32.totalorder %s124, %s140
      %p142 = scmp.eq.s32.totalorder %s23, 0
      %p143 = por %p141, %p142
      %s144 = ssub.s32 %s24, %s36
      %p145 = scmp.eq.s32.totalorder %s144, 0
      %s147 = sadd.s32 %s146, 1
      %s148 = scalar_select %p145, %s146, %s147
      %p151 = pneg %p145
      %p152 = scmp.eq.s32.totalorder %s17, 3
      %p153 = por %p151, %p152
      %p154 = scmp.ne.s32.totalorder %s146, %s149
      %p155 = scmp.eq.s32.totalorder %s17, 0
      %p156 = por %p154, %p155
      %p157 = scmp.ne.s32.totalorder %s146, %s149
      %p158 = scmp.eq.s32.totalorder %s22, 3
      %p159 = por %p157, %p158
      %p160 = scmp.ne.s32.totalorder %s149, %s150
      %p161 = scmp.eq.s32.totalorder %s22, 0
      %p162 = por %p160, %p161
      %p163 = scmp.ne.s32.totalorder %s149, %s150
      %p164 = scmp.eq.s32.totalorder %s23, 3
      %p165 = por %p163, %p164
      %p167 = scmp.ne.s32.totalorder %s150, %s166
      %p168 = scmp.eq.s32.totalorder %s23, 0
      %p169 = por %p167, %p168
      %s170 = smul.u32 %s25, 2
      %s171 = ssub.s32 1, %s170
      %s172 = smul.u32 %s24, %s171
      %s173 = sadd.s32 %s25, %s172
      %s174 = smul.u32 %s32, 2
      %s175 = ssub.s32 1, %s174
      %s176 = smul.u32 %s36, %s175
      %s177 = sadd.s32 %s32, %s176
      %s178 = ssub.s32 %s24, %s36
      %s179 = ssub.s32 %s173, %s177
      %s180 = sor.u32 %s178, %s179
      %p181 = scmp.eq.s32.totalorder %s180, 0
      %s183 = sadd.s32 %s182, 1
      %s184 = scalar_select %p181, %s182, %s183
      %p187 = pneg %p181
      %p188 = scmp.eq.s32.totalorder %s17, 3
      %p189 = por %p187, %p188
      %p190 = scmp.ne.s32.totalorder %s182, %s185
      %p191 = scmp.eq.s32.totalorder %s17, 0
      %p192 = por %p190, %p191
      %p193 = scmp.ne.s32.totalorder %s182, %s185
      %p194 = scmp.eq.s32.totalorder %s22, 3
      %p195 = por %p193, %p194
      %p196 = scmp.ne.s32.totalorder %s185, %s186
      %p197 = scmp.eq.s32.totalorder %s22, 0
      %p198 = por %p196, %p197
      %p199 = scmp.ne.s32.totalorder %s185, %s186
      %p200 = scmp.eq.s32.totalorder %s23, 3
      %p201 = por %p199, %p200
      %p203 = scmp.ne.s32.totalorder %s186, %s202
      %p204 = scmp.eq.s32.totalorder %s23, 0
      %p205 = por %p203, %p204
      %p206 = scmp.le.s32.totalorder 1, %s17
      %p207 = scmp.lt.s32.totalorder %s17, 5
      %p208 = pnand %p206, %p207
      %p209 = pneg %p208
      // Predicated region
      $region9: #{tpu_custom_call.1} parent=5 // pred_check
        _
      $region10: #{tpu_custom_call.1} parent=5 // pred_check_branch
        %211 = sbr.rel (%p208) target = $region12
      $region11: #{tpu_custom_call.1} parent=5 // pred_region
        %s212 = ssub.s32 %s17, 1
        // Predicated region
        $region13: #{tpu_custom_call.1} parent=11 // pred_check
          %p213 = pneg %p50
        $region14: #{tpu_custom_call.1} parent=11 // pred_check_branch
          %215 = sbr.rel (%p213) target = $region16
        $region15: #{tpu_custom_call.1} parent=11 // pred_region
          _
        $region16: #{tpu_custom_call.1} parent=11 // pred_fallthru
          _
      $region12: #{tpu_custom_call.1} parent=5 // pred_fallthru
        _
      %p216 = scmp.lt.s32.totalorder %s17, 4
      // Predicated region
      $region17: #{tpu_custom_call.1} parent=5 // pred_check
        %p217 = pneg %p216
      $region18: #{tpu_custom_call.1} parent=5 // pred_check_branch
        %219 = sbr.rel (%p217) target = $region20
      $region19: #{tpu_custom_call.1} parent=5 // pred_region
        // Predicated region
        $region21: #{tpu_custom_call.1} parent=19 // pred_check
          %p220 = pneg %p78
        $region22: #{tpu_custom_call.1} parent=19 // pred_check_branch
          %222 = sbr.rel (%p220) target = $region24
        $region23: #{tpu_custom_call.1} parent=19 // pred_region
          %s223 = sand.u32 %s68, 1
          %s224 = scalar_lea.sflag [#allocation6], %s223
          %s225 = sand.u32 %s68, 1
          %s226 = smul.addr %s225, 32
          %s227 = scalar_lea.vmem [#allocation5], %s226
          %s228 = smul.u32 %s25, 2
          %s229 = ssub.s32 1, %s228
          %s230 = smul.u32 %s24, %s229
          %s231 = sadd.s32 %s25, %s230
          %s232 = smul.u32 4, %s231
          %234 = vsyncadd %s224, 0
          %s235 = smul.addr %s232, 8
          %s236 = scalar_lea.hbm %s1, %s235
          %s237 = sshll.u32 %s236, 4
          %s238 = int_to_ptr.hbm [resolvable:$true] %s237
          %s239 = sshll.u32 %s227, 4
          %s240 = int_to_ptr.vmem [resolvable:$true] %s239
          %245 = dma.hbm_to_vmem [thread:$0]  %s238, 512, %s240, %s224, 128, 128, 8
        $region24: #{tpu_custom_call.1} parent=19 // pred_fallthru
          _
        // Predicated region
        $region25: #{tpu_custom_call.1} parent=19 // pred_check
          %p246 = pneg %p104
        $region26: #{tpu_custom_call.1} parent=19 // pred_check_branch
          %248 = sbr.rel (%p246) target = $region28
        $region27: #{tpu_custom_call.1} parent=19 // pred_region
          %p249 = scmp.lt.s32.totalorder %s24, 1
          %s250 = scalar_select %p249, %s24, 1
          %s251 = smul.addr %s250, 3
          %s252 = smul.addr %s251, 4
          %s253 = scalar_lea.vmem %s2, %s252
        $region28: #{tpu_custom_call.1} parent=19 // pred_fallthru
          _
        // Predicated region
        $region29: #{tpu_custom_call.1} parent=19 // pred_check
          %p254 = pneg %p130
        $region30: #{tpu_custom_call.1} parent=19 // pred_check_branch
          %256 = sbr.rel (%p254) target = $region32
        $region31: #{tpu_custom_call.1} parent=19 // pred_region
          %p257 = scmp.lt.s32.totalorder %s24, 1
          %s258 = scalar_select %p257, %s24, 1
          %s259 = smul.addr %s258, 4
          %s260 = smul.addr %s259, 4
          %s261 = scalar_lea.vmem %s3, %s260
        $region32: #{tpu_custom_call.1} parent=19 // pred_fallthru
          _
        // Predicated region
        $region33: #{tpu_custom_call.1} parent=19 // pred_check
          %p262 = pneg %p156
        $region34: #{tpu_custom_call.1} parent=19 // pred_check_branch
          %264 = sbr.rel (%p262) target = $region36
        $region35: #{tpu_custom_call.1} parent=19 // pred_region
          %p265 = scmp.lt.s32.totalorder %s24, 1
          %s266 = scalar_select %p265, %s24, 1
          %s267 = scalar_lea.vmem %s4, %s266
        $region36: #{tpu_custom_call.1} parent=19 // pred_fallthru
          _
      $region20: #{tpu_custom_call.1} parent=5 // pred_fallthru
        _
      %p268 = scmp.le.s32.totalorder 1, %s17
      %p269 = scmp.lt.s32.totalorder %s17, 5
      %p270 = pnand %p268, %p269
      %p271 = pneg %p270
      // Predicated region
      $region37: #{tpu_custom_call.1} parent=5 // pred_check
        _
      $region38: #{tpu_custom_call.1} parent=5 // pred_check_branch
        %273 = sbr.rel (%p270) target = $region40
      $region39: #{tpu_custom_call.1} parent=5 // pred_region
        %s274 = ssub.s32 %s17, 1
        %s275 = sand.u32 %s71, 1
        %s276 = scalar_lea.sflag [#allocation6], %s275
        %s277 = sand.u32 %s71, 1
        %s278 = smul.addr %s277, 32
        %s279 = scalar_lea.vmem [#allocation5], %s278
        // Predicated region
        $region41: #{tpu_custom_call.1} parent=39 // pred_check
          %p280 = pneg %p84
        $region42: #{tpu_custom_call.1} parent=39 // pred_check_branch
          %282 = sbr.rel (%p280) target = $region44
        $region43: #{tpu_custom_call.1} parent=39 // pred_region
          %284 = dma.done %s276, 512
        $region44: #{tpu_custom_call.1} parent=39 // pred_fallthru
          _
        %p285 = pneg %p50
        %p286 = pneg %p47
        %s287 = sand.u32 %s71, 1
        %s288 = scalar_lea.sflag [#allocation6], %s287
        %s289 = sand.u32 %s71, 1
        %s290 = smul.addr %s289, 32
        %s291 = scalar_lea.vmem [#allocation5], %s290
        %p292 = pneg %p84
        %p293 = pneg %p81
        %p294 = scmp.lt.s32.totalorder %s26, 1
        %s295 = scalar_select %p294, %s26, 1
        %s296 = smul.addr %s295, 3
        %s297 = smul.addr %s296, 4
        %s298 = scalar_lea.vmem %s2, %s297
        %p299 = pneg %p110
        %p300 = pneg %p107
        %p301 = scmp.lt.s32.totalorder %s26, 1
        %s302 = scalar_select %p301, %s26, 1
        %s303 = smul.addr %s302, 4
        %s304 = smul.addr %s303, 4
        %s305 = scalar_lea.vmem %s3, %s304
        %p306 = pneg %p136
        %p307 = pneg %p133
        %p308 = scmp.lt.s32.totalorder %s26, 1
        %s309 = scalar_select %p308, %s26, 1
        %s310 = scalar_lea.vmem %s4, %s309
        %p311 = pneg %p162
        %p312 = pneg %p159
        %p313 = pneg %p198
        %p314 = pneg %p195
        %s315 = sand.u32 %s185, 1
        %s316 = scalar_lea.sflag [#allocation7], %s315
        %s317 = sand.u32 %s185, 1
        %s318 = smul.addr %s317, 32
        %s319 = scalar_lea.vmem [#allocation8], %s318
        %s320 = smul.u32 %s27, 2
        %s321 = ssub.s32 1, %s320
        %s322 = smul.u32 %s26, %s321
        %s323 = sadd.s32 %s27, %s322
        %s324 = smul.u32 4, %s323
        %p325 = scmp.lt.s32.totalorder %s26, 1
        %s326 = scalar_select %p325, %s26, 1
        %s327 = smul.addr %s326, 3
        %s328 = smul.addr %s327, 4
        %s329 = scalar_lea.vmem %s2, %s328
        %p330 = scmp.lt.s32.totalorder %s26, 1
        %s331 = scalar_select %p330, %s26, 1
        %s332 = smul.addr %s331, 4
        %s333 = smul.addr %s332, 4
        %s334 = scalar_lea.vmem %s3, %s333
        %p335 = scmp.lt.s32.totalorder %s26, 1
        %s336 = scalar_select %p335, %s26, 1
        %s337 = scalar_lea.vmem %s4, %s336
        %s338 = smul.u32 %s27, 2
        %s339 = ssub.s32 1, %s338
        %s340 = smul.u32 %s26, %s339
        %s341 = sadd.s32 %s27, %s340
        %s342 = smul.u32 4, %s341
        %p344 = scmp.eq.s32.totalorder %s27, 0
        // Predicated region
        $region45: #{tpu_custom_call.1} parent=39 // pred_check
          %p345 = pneg %p344
        $region46: #{tpu_custom_call.1} parent=39 // pred_check_branch
          %347 = sbr.rel (%p345) target = $region48
        $region47: #{tpu_custom_call.1} parent=39 // pred_region
          %vm348 = vcmask 261120
          %349 = vst.msk [vmem:[#allocation3] sm:$0xff] %vm348, 0.0
          %350 = vst.msk [vmem:[#allocation4] sm:$0xff] %vm348, 0.0
        $region48: #{tpu_custom_call.1} parent=39 // pred_fallthru
          _
        %v351 = vld [vmem:[%s279] sm:$0xff]
        %v352 = vld [vmem:[%s279 + $0x8] sm:$0xff]
        %v353 = vld [vmem:[%s279 + $0x10] sm:$0xff]
        %v354 = vld [vmem:[%s279 + $0x18] sm:$0xff]
        %v355 = vpack.c.bf16 %v352, %v351
        %v356 = vpack.c.bf16 %v354, %v353
        %v357 = vld [vmem:[%s329] sm:$0xf]
        %v358 = vld [vmem:[%s329 + $0x4] sm:$0xf]
        %v359 = vld [vmem:[%s329 + $0x8] sm:$0x7]
        %v360 = vld [vmem:[%s337] sm:$0x1]
        %v362 = vperm.slane %v360, 0
        %v367 = vunpack.c.l.b16 %v357
        %v368 = vunpack.c.l.b16 %v358
        %v369 = vunpack.c.l.b16 %v359
        %v370 = vpack.c.b16 %v368, %v367
        %v371 = vpack.c.b16 %v369, %v369
        %vm373 = vcmask 171008
        %v375 = vsel %vm373, %v355, 0
        %v378 = vsel %vm373, %v356, 0
        %vm380 = vcmask 1041408
        %vm381 = vcmask 1042432
        %v382 = vsel %vm380, 4294967295, 65535
        %v383 = vsel %vm381, %v382, 0
        %v385 = vand.u32 %v371, %v383
        %387 = vmatpush.bf16.msra.mxu0 0
        %388 = vmatpush.bf16.msra.mxu0 0
        %389 = vmatpush.bf16.msra.mxu0 0
        %390 = vmatpush.bf16.msra.mxu0 0
        %391 = vmatpush.bf16.msra.mxu0 0
        %392 = vmatpush.bf16.msra.mxu0 0
        %393 = vmatpush.bf16.msra.mxu0 %v385
        %394 = vmatpush.bf16.msra.mxu0 %v370
        %395 = vmatmul.bf16.gmra.mxu0 %v375
        %v396 = vpop.f32.mrf.mxu0
        %v397 = vadd.f32 %v362, %v396
        %v398 = vpop.f32.mrf.mxu0
        %v399 = vadd.f32 %v362, %v398
        %400 = vmatmul.bf16.gmra.mxu0 %v378
        %v401 = vpop.f32.mrf.mxu0
        %v402 = vadd.f32 %v362, %v401
        %v403 = vpop.f32.mrf.mxu0
        %v404 = vadd.f32 %v362, %v403
        %405 = vdwg.mxu0
        %406 = vst [vmem:[#allocation2] sm:$0xff] %v397
        %407 = vst [vmem:[#allocation2 + $0x8] sm:$0xff] %v399
        %408 = vst [vmem:[#allocation2 + $0x10] sm:$0xff] %v402
        %409 = vst [vmem:[#allocation2 + $0x18] sm:$0xff] %v404
        %v410 = vld [vmem:[%s0] sm:$0xff]
        %s411 = smul.u32 %s27, 2
        %s412 = ssub.s32 1, %s411
        %s413 = smul.u32 %s26, %s412
        %s414 = sadd.s32 %s27, %s413
        %s415 = smul.u32 %s414, 4
        %s416 = smul.u32 %s26, 3
        %s417 = sadd.s32 %s415, %s416
        %v418 = vstv %s417
        %vm419 = vcmp.lt.s32.totalorder %v418, %v410
        %v420 = vld [vmem:[#allocation3] sm:$0xff]
        %s421 = smul.u32 %s416, 8
        %s422 = scalar_lea.vmem [#allocation2], %s421
        %v423 = vld [vmem:[%s422] sm:$0xff]
        %v424 = vpack.c.bf16 %v420, %v420
        %v425 = vld [vmem:[%s334] sm:$0xf]
        %v426 = vld [vmem:[%s334 + $0x4] sm:$0xf]
        %v427 = vld [vmem:[%s334 + $0x8] sm:$0xf]
        %v428 = vld [vmem:[%s334 + $0xc] sm:$0xf]
        %v433 = vunpack.c.l.b16 %v425
        %v434 = vunpack.c.l.b16 %v426
        %v435 = vunpack.c.l.b16 %v427
        %v436 = vunpack.c.l.b16 %v428
        %v437 = vpack.c.b16 %v434, %v433
        %v438 = vpack.c.b16 %v436, %v435
        %vm441 = vcmask 261120
        %v443 = vsel %vm441, %v424, 0
        %445 = vmatpush.bf16.msra.mxu0 0
        %446 = vmatpush.bf16.msra.mxu0 0
        %447 = vmatpush.bf16.msra.mxu0 0
        %448 = vmatpush.bf16.msra.mxu0 0
        %449 = vmatpush.bf16.msra.mxu0 0
        %450 = vmatpush.bf16.msra.mxu0 0
        %451 = vmatpush.bf16.msra.mxu0 %v438
        %452 = vmatpush.bf16.msra.mxu0 %v437
        %453 = vmatmul.bf16.gmra.mxu0 %v443
        %v454 = vpop.f32.mrf.mxu0
        %v455 = vadd.f32 0.0, %v454
        %v456 = vpop.f32.mrf.mxu0
        %457 = vdwg.mxu0
        %v458 = vadd.f32 %v423, %v455
        %v459 = vxor.u32 %v458, 2147483648
        %v460 = vmul.f32 %v459, 1.442695
        %v461 = vpow.pop %v460
        %v462 = vadd.f32 %v461, 1.0
        %v463 = vrcp.pop %v462
        %v464 = vmul.f32 %v462, %v463
        %v465 = vsub.f32 1.0, %v464
        %v466 = vmul.f32 %v463, %v465
        %v467 = vadd.f32 %v463, %v466
        %vm468 = vweird.f32 %v462
        %vm469 = vweird.f32 %v463
        %vm470 = vmor %vm468, %vm469
        %v471 = vsel %vm470, %v463, %v467
        %v472 = vand.u32 2147483647, %v462
        %vm473 = vcmp.eq.f32.partialorder %v472, 8.507059e+37
        %v474 = vand.u32 %v462, 2147483648
        %v475 = vor.u32 1.1754944e-38, %v474
        %v476 = vsel %vm473, %v475, %v471
        %v477 = vmul.f32 1.0, %v476
        %v478 = vtanh.pop %v458
        %v479 = vld [vmem:[#allocation4] sm:$0xff]
        %481 = vrot.lane.b32.xlu0 %v479, 32
        %v482 = vpop.permute.xlu0 %481
        %v484 = vmul.f32 %v477, %v482
        %486 = vrot.lane.b32.xlu0 %v478, 32
        %v487 = vpop.permute.xlu0 %486
        %v489 = vmul.f32 %v477, %v487
        %491 = vrot.lane.b32.xlu0 %v489, 32
        %v492 = vpop.permute.xlu0 %491
        %v494 = vadd.f32 %v484, %v492
        %v495 = vtanh.pop %v494
        %497 = vrot.lane.b32.xlu0 %v495, 32
        %v498 = vpop.permute.xlu0 %497
        %v500 = vmul.f32 %v477, %v498
        %v501 = vsel %vm419, 1, 0
        %502 = vset.pattern.permute.xlu0 0
        %503 = vperm.xlu0 %502, %v501
        %v504 = vpop.permute.xlu0 %503
        %vm505 = vcmp.eq.s32.totalorder %v504, 1
        %v506 = vsel %vm505, %v494, %v482
        %508 = vrot.lane.b32.xlu0 %v506, 96
        %v509 = vpop.permute.xlu0 %508
        %511 = vst.msk [vmem:[#allocation4] sm:$0xff] %vm441, %v509
        %513 = vrot.lane.b32.xlu0 %v420, 64
        %v514 = vpop.permute.xlu0 %513
        %v516 = vsel %vm505, %v500, %v514
        %518 = vrot.lane.b32.xlu0 %v516, 64
        %v519 = vpop.permute.xlu0 %518
        %521 = vst.msk [vmem:[#allocation3] sm:$0xff] %vm441, %v519
        %v522 = vsel %vm505, %v500, 0.0
        %524 = vrot.lane.b32.xlu0 %v522, 64
        %v525 = vpop.permute.xlu0 %524
        %s527 = scalar_lea.vmem %s319, %s421 [#allocation8]
        %528 = vst.msk [vmem:[%s527] sm:$0xff] %vm441, %v525
        %s529 = sadd.s32 %s26, 1
        %s530 = sadd.s32 %s415, %s529
        %v531 = vstv %s530
        %vm532 = vcmp.lt.s32.totalorder %v531, %v410
        %v533 = vld [vmem:[#allocation3] sm:$0xff]
        %s534 = smul.u32 %s529, 8
        %s535 = scalar_lea.vmem [#allocation2], %s534
        %v536 = vld [vmem:[%s535] sm:$0xff]
        %v537 = vpack.c.bf16 %v533, %v533
        %v538 = vld [vmem:[%s334] sm:$0xf]
        %v539 = vld [vmem:[%s334 + $0x4] sm:$0xf]
        %v540 = vld [vmem:[%s334 + $0x8] sm:$0xf]
        %v541 = vld [vmem:[%s334 + $0xc] sm:$0xf]
        %v546 = vunpack.c.l.b16 %v538
        %v547 = vunpack.c.l.b16 %v539
        %v548 = vunpack.c.l.b16 %v540
        %v549 = vunpack.c.l.b16 %v541
        %v550 = vpack.c.b16 %v547, %v546
        %v551 = vpack.c.b16 %v549, %v548
        %v555 = vsel %vm441, %v537, 0
        %557 = vmatpush.bf16.msra.mxu0 0
        %558 = vmatpush.bf16.msra.mxu0 0
        %559 = vmatpush.bf16.msra.mxu0 0
        %560 = vmatpush.bf16.msra.mxu0 0
        %561 = vmatpush.bf16.msra.mxu0 0
        %562 = vmatpush.bf16.msra.mxu0 0
        %563 = vmatpush.bf16.msra.mxu0 %v551
        %564 = vmatpush.bf16.msra.mxu0 %v550
        %565 = vmatmul.bf16.gmra.mxu0 %v555
        %v566 = vpop.f32.mrf.mxu0
        %v567 = vadd.f32 0.0, %v566
        %v568 = vpop.f32.mrf.mxu0
        %569 = vdwg.mxu0
        %v570 = vadd.f32 %v536, %v567
        %v571 = vxor.u32 %v570, 2147483648
        %v572 = vmul.f32 %v571, 1.442695
        %v573 = vpow.pop %v572
        %v574 = vadd.f32 %v573, 1.0
        %v575 = vrcp.pop %v574
        %v576 = vmul.f32 %v574, %v575
        %v577 = vsub.f32 1.0, %v576
        %v578 = vmul.f32 %v575, %v577
        %v579 = vadd.f32 %v575, %v578
        %vm580 = vweird.f32 %v574
        %vm581 = vweird.f32 %v575
        %vm582 = vmor %vm580, %vm581
        %v583 = vsel %vm582, %v575, %v579
        %v584 = vand.u32 2147483647, %v574
        %vm585 = vcmp.eq.f32.partialorder %v584, 8.507059e+37
        %v586 = vand.u32 %v574, 2147483648
        %v587 = vor.u32 1.1754944e-38, %v586
        %v588 = vsel %vm585, %v587, %v583
        %v589 = vmul.f32 1.0, %v588
        %v590 = vtanh.pop %v570
        %v591 = vld [vmem:[#allocation4] sm:$0xff]
        %593 = vrot.lane.b32.xlu0 %v591, 32
        %v594 = vpop.permute.xlu0 %593
        %v596 = vmul.f32 %v589, %v594
        %598 = vrot.lane.b32.xlu0 %v590, 32
        %v599 = vpop.permute.xlu0 %598
        %v601 = vmul.f32 %v589, %v599
        %603 = vrot.lane.b32.xlu0 %v601, 32
        %v604 = vpop.permute.xlu0 %603
        %v606 = vadd.f32 %v596, %v604
        %v607 = vtanh.pop %v606
        %609 = vrot.lane.b32.xlu0 %v607, 32
        %v610 = vpop.permute.xlu0 %609
        %v612 = vmul.f32 %v589, %v610
        %v613 = vsel %vm532, 1, 0
        %614 = vset.pattern.permute.xlu0 0
        %615 = vperm.xlu0 %614, %v613
        %v616 = vpop.permute.xlu0 %615
        %vm617 = vcmp.eq.s32.totalorder %v616, 1
        %v618 = vsel %vm617, %v606, %v594
        %620 = vrot.lane.b32.xlu0 %v618, 96
        %v621 = vpop.permute.xlu0 %620
        %623 = vst.msk [vmem:[#allocation4] sm:$0xff] %vm441, %v621
        %625 = vrot.lane.b32.xlu0 %v533, 64
        %v626 = vpop.permute.xlu0 %625
        %v628 = vsel %vm617, %v612, %v626
        %630 = vrot.lane.b32.xlu0 %v628, 64
        %v631 = vpop.permute.xlu0 %630
        %633 = vst.msk [vmem:[#allocation3] sm:$0xff] %vm441, %v631
        %v634 = vsel %vm617, %v612, 0.0
        %636 = vrot.lane.b32.xlu0 %v634, 64
        %v637 = vpop.permute.xlu0 %636
        %s639 = scalar_lea.vmem %s319, %s534 [#allocation8]
        %640 = vst.msk [vmem:[%s639] sm:$0xff] %vm441, %v637
        %s641 = ssub.s32 2, %s26
        %s642 = sadd.s32 %s415, %s641
        %v643 = vstv %s642
        %vm644 = vcmp.lt.s32.totalorder %v643, %v410
        %v645 = vld [vmem:[#allocation3] sm:$0xff]
        %s646 = smul.u32 %s641, 8
        %s647 = scalar_lea.vmem [#allocation2], %s646
        %v648 = vld [vmem:[%s647] sm:$0xff]
        %v649 = vpack.c.bf16 %v645, %v645
        %v650 = vld [vmem:[%s334] sm:$0xf]
        %v651 = vld [vmem:[%s334 + $0x4] sm:$0xf]
        %v652 = vld [vmem:[%s334 + $0x8] sm:$0xf]
        %v653 = vld [vmem:[%s334 + $0xc] sm:$0xf]
        %v658 = vunpack.c.l.b16 %v650
        %v659 = vunpack.c.l.b16 %v651
        %v660 = vunpack.c.l.b16 %v652
        %v661 = vunpack.c.l.b16 %v653
        %v662 = vpack.c.b16 %v659, %v658
        %v663 = vpack.c.b16 %v661, %v660
        %v667 = vsel %vm441, %v649, 0
        %669 = vmatpush.bf16.msra.mxu0 0
        %670 = vmatpush.bf16.msra.mxu0 0
        %671 = vmatpush.bf16.msra.mxu0 0
        %672 = vmatpush.bf16.msra.mxu0 0
        %673 = vmatpush.bf16.msra.mxu0 0
        %674 = vmatpush.bf16.msra.mxu0 0
        %675 = vmatpush.bf16.msra.mxu0 %v663
        %676 = vmatpush.bf16.msra.mxu0 %v662
        %677 = vmatmul.bf16.gmra.mxu0 %v667
        %v678 = vpop.f32.mrf.mxu0
        %v679 = vadd.f32 0.0, %v678
        %v680 = vpop.f32.mrf.mxu0
        %681 = vdwg.mxu0
        %v682 = vadd.f32 %v648, %v679
        %v683 = vxor.u32 %v682, 2147483648
        %v684 = vmul.f32 %v683, 1.442695
        %v685 = vpow.pop %v684
        %v686 = vadd.f32 %v685, 1.0
        %v687 = vrcp.pop %v686
        %v688 = vmul.f32 %v686, %v687
        %v689 = vsub.f32 1.0, %v688
        %v690 = vmul.f32 %v687, %v689
        %v691 = vadd.f32 %v687, %v690
        %vm692 = vweird.f32 %v686
        %vm693 = vweird.f32 %v687
        %vm694 = vmor %vm692, %vm693
        %v695 = vsel %vm694, %v687, %v691
        %v696 = vand.u32 2147483647, %v686
        %vm697 = vcmp.eq.f32.partialorder %v696, 8.507059e+37
        %v698 = vand.u32 %v686, 2147483648
        %v699 = vor.u32 1.1754944e-38, %v698
        %v700 = vsel %vm697, %v699, %v695
        %v701 = vmul.f32 1.0, %v700
        %v702 = vtanh.pop %v682
        %v703 = vld [vmem:[#allocation4] sm:$0xff]
        %705 = vrot.lane.b32.xlu0 %v703, 32
        %v706 = vpop.permute.xlu0 %705
        %v708 = vmul.f32 %v701, %v706
        %710 = vrot.lane.b32.xlu0 %v702, 32
        %v711 = vpop.permute.xlu0 %710
        %v713 = vmul.f32 %v701, %v711
        %715 = vrot.lane.b32.xlu0 %v713, 32
        %v716 = vpop.permute.xlu0 %715
        %v718 = vadd.f32 %v708, %v716
        %v719 = vtanh.pop %v718
        %721 = vrot.lane.b32.xlu0 %v719, 32
        %v722 = vpop.permute.xlu0 %721
        %v724 = vmul.f32 %v701, %v722
        %v725 = vsel %vm644, 1, 0
        %726 = vset.pattern.permute.xlu0 0
        %727 = vperm.xlu0 %726, %v725
        %v728 = vpop.permute.xlu0 %727
        %vm729 = vcmp.eq.s32.totalorder %v728, 1
        %v730 = vsel %vm729, %v718, %v706
        %732 = vrot.lane.b32.xlu0 %v730, 96
        %v733 = vpop.permute.xlu0 %732
        %735 = vst.msk [vmem:[#allocation4] sm:$0xff] %vm441, %v733
        %737 = vrot.lane.b32.xlu0 %v645, 64
        %v738 = vpop.permute.xlu0 %737
        %v740 = vsel %vm729, %v724, %v738
        %742 = vrot.lane.b32.xlu0 %v740, 64
        %v743 = vpop.permute.xlu0 %742
        %745 = vst.msk [vmem:[#allocation3] sm:$0xff] %vm441, %v743
        %v746 = vsel %vm729, %v724, 0.0
        %748 = vrot.lane.b32.xlu0 %v746, 64
        %v749 = vpop.permute.xlu0 %748
        %s751 = scalar_lea.vmem %s319, %s646 [#allocation8]
        %752 = vst.msk [vmem:[%s751] sm:$0xff] %vm441, %v749
        %s753 = smul.u32 %s26, 4294967293
        %s754 = sadd.s32 %s753, 3
        %s755 = sadd.s32 %s415, %s754
        %v756 = vstv %s755
        %vm757 = vcmp.lt.s32.totalorder %v756, %v410
        %v758 = vld [vmem:[#allocation3] sm:$0xff]
        %s759 = smul.u32 %s754, 8
        %s760 = scalar_lea.vmem [#allocation2], %s759
        %v761 = vld [vmem:[%s760] sm:$0xff]
        %v762 = vpack.c.bf16 %v758, %v758
        %v763 = vld [vmem:[%s334] sm:$0xf]
        %v764 = vld [vmem:[%s334 + $0x4] sm:$0xf]
        %v765 = vld [vmem:[%s334 + $0x8] sm:$0xf]
        %v766 = vld [vmem:[%s334 + $0xc] sm:$0xf]
        %v771 = vunpack.c.l.b16 %v763
        %v772 = vunpack.c.l.b16 %v764
        %v773 = vunpack.c.l.b16 %v765
        %v774 = vunpack.c.l.b16 %v766
        %v775 = vpack.c.b16 %v772, %v771
        %v776 = vpack.c.b16 %v774, %v773
        %v780 = vsel %vm441, %v762, 0
        %782 = vmatpush.bf16.msra.mxu0 0
        %783 = vmatpush.bf16.msra.mxu0 0
        %784 = vmatpush.bf16.msra.mxu0 0
        %785 = vmatpush.bf16.msra.mxu0 0
        %786 = vmatpush.bf16.msra.mxu0 0
        %787 = vmatpush.bf16.msra.mxu0 0
        %788 = vmatpush.bf16.msra.mxu0 %v776
        %789 = vmatpush.bf16.msra.mxu0 %v775
        %790 = vmatmul.bf16.gmra.mxu0 %v780
        %v791 = vpop.f32.mrf.mxu0
        %v792 = vadd.f32 0.0, %v791
        %v793 = vpop.f32.mrf.mxu0
        %794 = vdwg.mxu0
        %v795 = vadd.f32 %v761, %v792
        %v796 = vxor.u32 %v795, 2147483648
        %v797 = vmul.f32 %v796, 1.442695
        %v798 = vpow.pop %v797
        %v799 = vadd.f32 %v798, 1.0
        %v800 = vrcp.pop %v799
        %v801 = vmul.f32 %v799, %v800
        %v802 = vsub.f32 1.0, %v801
        %v803 = vmul.f32 %v800, %v802
        %v804 = vadd.f32 %v800, %v803
        %vm805 = vweird.f32 %v799
        %vm806 = vweird.f32 %v800
        %vm807 = vmor %vm805, %vm806
        %v808 = vsel %vm807, %v800, %v804
        %v809 = vand.u32 2147483647, %v799
        %vm810 = vcmp.eq.f32.partialorder %v809, 8.507059e+37
        %v811 = vand.u32 %v799, 2147483648
        %v812 = vor.u32 1.1754944e-38, %v811
        %v813 = vsel %vm810, %v812, %v808
        %v814 = vmul.f32 1.0, %v813
        %v815 = vtanh.pop %v795
        %v816 = vld [vmem:[#allocation4] sm:$0xff]
        %818 = vrot.lane.b32.xlu0 %v816, 32
        %v819 = vpop.permute.xlu0 %818
        %v821 = vmul.f32 %v814, %v819
        %823 = vrot.lane.b32.xlu0 %v815, 32
        %v824 = vpop.permute.xlu0 %823
        %v826 = vmul.f32 %v814, %v824
        %828 = vrot.lane.b32.xlu0 %v826, 32
        %v829 = vpop.permute.xlu0 %828
        %v831 = vadd.f32 %v821, %v829
        %v832 = vtanh.pop %v831
        %834 = vrot.lane.b32.xlu0 %v832, 32
        %v835 = vpop.permute.xlu0 %834
        %v837 = vmul.f32 %v814, %v835
        %v838 = vsel %vm757, 1, 0
        %839 = vset.pattern.permute.xlu0 0
        %840 = vperm.xlu0 %839, %v838
        %v841 = vpop.permute.xlu0 %840
        %vm842 = vcmp.eq.s32.totalorder %v841, 1
        %v843 = vsel %vm842, %v831, %v819
        %845 = vrot.lane.b32.xlu0 %v843, 96
        %v846 = vpop.permute.xlu0 %845
        %848 = vst.msk [vmem:[#allocation4] sm:$0xff] %vm441, %v846
        %850 = vrot.lane.b32.xlu0 %v758, 64
        %v851 = vpop.permute.xlu0 %850
        %v853 = vsel %vm842, %v837, %v851
        %855 = vrot.lane.b32.xlu0 %v853, 64
        %v856 = vpop.permute.xlu0 %855
        %858 = vst.msk [vmem:[#allocation3] sm:$0xff] %vm441, %v856
        %v859 = vsel %vm842, %v837, 0.0
        %861 = vrot.lane.b32.xlu0 %v859, 64
        %v862 = vpop.permute.xlu0 %861
        %s864 = scalar_lea.vmem %s319, %s759 [#allocation8]
        %865 = vst.msk [vmem:[%s864] sm:$0xff] %vm441, %v862
        %s866 = sand.u32 %s185, 1
        %s867 = scalar_lea.sflag [#allocation7], %s866
        %s868 = sand.u32 %s185, 1
        %s869 = smul.addr %s868, 32
        %s870 = scalar_lea.vmem [#allocation8], %s869
        // Predicated region
        $region49: #{tpu_custom_call.1} parent=39 // pred_check
          %p871 = pneg %p195
        $region50: #{tpu_custom_call.1} parent=39 // pred_check_branch
          %873 = sbr.rel (%p871) target = $region52
        $region51: #{tpu_custom_call.1} parent=39 // pred_region
          %s874 = smul.u32 %s27, 2
          %s875 = ssub.s32 1, %s874
          %s876 = smul.u32 %s26, %s875
          %s877 = sadd.s32 %s27, %s876
          %s878 = smul.u32 4, %s877
          %880 = vsyncadd %s867, 0
          %s881 = smul.addr %s26, 8
          %s882 = sadd.s32 %s878, %s881
          %s883 = smul.addr %s882, 8
          %s884 = scalar_lea.hbm %s5, %s883
          %s885 = sshll.u32 %s870, 4
          %s886 = int_to_ptr.vmem [resolvable:$true] %s885
          %s887 = sshll.u32 %s884, 4
          %s888 = int_to_ptr.hbm [resolvable:$true] %s887
          %893 = dma.vmem_to_hbm [thread:$0]  %s886, 512, %s888, %s867, 128, 128, 8
        $region52: #{tpu_custom_call.1} parent=39 // pred_fallthru
          _
      $region40: #{tpu_custom_call.1} parent=5 // pred_fallthru
        _
      %p894 = scmp.le.s32.totalorder 2, %s17
      // Predicated region
      $region53: #{tpu_custom_call.1} parent=5 // pred_check
        %p895 = pneg %p894
      $region54: #{tpu_custom_call.1} parent=5 // pred_check_branch
        %897 = sbr.rel (%p895) target = $region56
      $region55: #{tpu_custom_call.1} parent=5 // pred_region
        %s898 = ssub.s32 %s17, 2
        // Predicated region
        $region57: #{tpu_custom_call.1} parent=55 // pred_check
          %p899 = pneg %p201
        $region58: #{tpu_custom_call.1} parent=55 // pred_check_branch
          %901 = sbr.rel (%p899) target = $region60
        $region59: #{tpu_custom_call.1} parent=55 // pred_region
          %s902 = sand.u32 %s186, 1
          %s903 = scalar_lea.sflag [#allocation7], %s902
          %s904 = sand.u32 %s186, 1
          %s905 = smul.addr %s904, 32
          %s906 = scalar_lea.vmem [#allocation8], %s905
          %908 = dma.done %s903, 512
        $region60: #{tpu_custom_call.1} parent=55 // pred_fallthru
          _
      $region56: #{tpu_custom_call.1} parent=5 // pred_fallthru
        _
    $region6: #{tpu_custom_call.1} parent=1 // loop_footer
      %s21 = sadd.s32 1, %s17
    $region7: #{tpu_custom_call.1} parent=1 // loop_footer_branch
      %16 = sbr.rel target = $region3
    $region8: #{tpu_custom_call.1} parent=1 // loop_exit
      _
    %909 = vsyncpa [#allocation6], 1
    %s910 = scalar_lea.sflag [#allocation6], 1
    %911 = vsyncpa %s910, 1
    %912 = vsyncpa [#allocation7], 1
    %s913 = scalar_lea.sflag [#allocation7], 1
    %914 = vsyncpa %s913, 1

</llo_original>
